<compile_context>
chip_gen: v7x
topology: tpu7x:2x2x1
jax: 0.10.0
libtpu: 0.0.40
codegen_flags: <defaults>
</compile_context>

<pallas_src>
import math

import jax
import jax.numpy as jnp
from jax.experimental import pallas as pl
from jax.experimental.pallas import tpu as pltpu


def _round_up(x, m):
    return ((x + m - 1) // m) * m


def _choose_tm(M, tm_max):
    """Largest multiple of 16 that divides M, capped so the grid has >= 2
    steps whenever M allows it (v7x has 2 TensorCores). Returns None when M
    is ragged (caller falls back to pad + slice)."""
    if M < 16 or M % 16 != 0:
        return None
    cap = min(tm_max, max(16, M // 2))
    cap -= cap % 16
    for t in range(cap, 15, -16):
        if M % t == 0:
            return t
    return None


# ----------------------------- Pallas kernel -------------------------------

def _patch_embed_kernel(p_ref, w_ref, b_ref, o_ref):
    # (tm, K) bf16 x (K, Ep) bf16 on the MXU with f32 accumulation (default
    # precision -> single pass); bias add on the VPU; store in out dtype.
    acc = jnp.dot(p_ref[...], w_ref[...], preferred_element_type=jnp.float32)
    o_ref[...] = (acc + b_ref[...]).astype(o_ref.dtype)


def patch_embed_matmul(patches, w_mat, bias, *, tm_max=1024,
                       out_dtype=jnp.bfloat16):
    """patches: (M, K), w_mat: (K, E), bias: (E,) -> (M, E) out_dtype.

    - M is tiled over the grid ('parallel'); tm is picked to divide M (no M
      pad, no output slice on M) and to give >= 2 grid steps when possible.
    - K is left unpadded (full-dim block); only E is padded to a multiple of
      128 for lane-dense stores, and only if needed.
    - Inputs bf16, accumulation f32, output bf16 (halves output HBM bytes).
    """
    M, K = patches.shape
    E = w_mat.shape[1]
    Ep = E if E % 128 == 0 else _round_up(E, 128)

    tm = _choose_tm(M, tm_max)
    if tm is None:
        # Ragged M: pad to a multiple of tm and slice off afterwards
        # (padded rows would hold bias values, never exposed to the caller).
        tm = min(tm_max, _round_up(M, 16))
        Mp = _round_up(M, tm)
    else:
        Mp = M

    patches_in = patches.astype(jnp.bfloat16)
    if Mp != M:
        patches_in = jnp.pad(patches_in, ((0, Mp - M), (0, 0)))
    w_in = w_mat.astype(jnp.bfloat16)
    b_in = bias.astype(jnp.float32).reshape(1, E)
    if Ep != E:
        w_in = jnp.pad(w_in, ((0, 0), (0, Ep - E)))
        b_in = jnp.pad(b_in, ((0, 0), (0, Ep - E)))

    out_bytes = jnp.dtype(out_dtype).itemsize
    # Double-buffered tile bytes + resident weight/bias + compiler slack.
    vmem_bytes = (2 * (tm * K * 2 + tm * Ep * out_bytes)
                  + 2 * (K * Ep * 2 + Ep * 4)
                  + (2 << 20))
    vmem_bytes = int(min(max(vmem_bytes, 4 << 20), 32 << 20))  # v7x-safe

    cost = pl.CostEstimate(
        flops=2 * Mp * K * Ep,
        transcendentals=0,
        bytes_accessed=Mp * K * 2 + K * Ep * 2 + Ep * 4 + Mp * Ep * out_bytes,
    )

    out = pl.pallas_call(
        _patch_embed_kernel,
        out_shape=jax.ShapeDtypeStruct((Mp, Ep), out_dtype),
        grid=(Mp // tm,),
        in_specs=[
            pl.BlockSpec((tm, K), lambda i: (i, 0)),   # pipelined row tiles
            pl.BlockSpec((K, Ep), lambda i: (0, 0)),   # weight resident
            pl.BlockSpec((1, Ep), lambda i: (0, 0)),   # bias resident
        ],
        out_specs=pl.BlockSpec((tm, Ep), lambda i: (i, 0)),
        compiler_params=pltpu.CompilerParams(
            dimension_semantics=("parallel",),
            vmem_limit_bytes=vmem_bytes,
            # Let XLA fuse the patch-extraction producer into the input DMA.
            allow_input_fusion=[True, False, False],
        ),
        cost_estimate=cost,
    )(patches_in, w_in, b_in)
    # TODO(synk): stronger version of input fusion — grid over (b, hh) with a
    # BlockSpec on the un-transposed x and do the (C,P,Ww,P)->(Ww,C*P*P)
    # rearrangement in VMEM before the dot, removing the HBM patch matrix.
    if Mp != M or Ep != E:
        out = out[:M, :E]
    return out


# ------------------------- module forward (glue) ---------------------------

def embedding_patches_forward(x, weight, bias, patch_size,
                              out_dtype=jnp.bfloat16):
    """Reproduces EmbeddingPatches.forward for the spectrogram (Conv2d) path.

    x:      (B, C, H, W) float32, NCHW  (PyTorch conv layout)
    weight: (E, C, P, P) float32        (nn.Conv2d weight layout)
    bias:   (E,) float32
    returns (B, L, E) where L = (H // P) * (W_padded // P)
    """
    B, C, H, W = x.shape
    P = patch_size

    # Pad ONLY the last dim to a multiple of P, same (quirky) ordering as the
    # PyTorch code: ceil(extra/2) appended at the end, floor(extra/2) at start.
    extra = (P - W % P) % P
    if extra > 0:
        end_pad = math.ceil(extra / 2)
        start_pad = math.floor(extra / 2)
        x = jnp.pad(x, ((0, 0), (0, 0), (0, 0), (start_pad, end_pad)))
    Wp = x.shape[-1]

    # 'valid' conv with stride == kernel drops any trailing rows in H.
    Hh = H // P
    Ww = Wp // P
    x = x[:, :, : Hh * P, :]

    # Cast early so the materialized patch intermediate is bf16 (half the
    # HBM bytes of the transpose round trip).
    x = x.astype(jnp.bfloat16)

    # Extract non-overlapping P x P patches -> (B*L, C*P*P), channel-major
    # within a patch to match Conv2d's (E, C, kh, kw) weight contraction order.
    xp = x.reshape(B, C, Hh, P, Ww, P)
    xp = jnp.transpose(xp, (0, 2, 4, 1, 3, 5))       # (B, Hh, Ww, C, P, P)
    patches = xp.reshape(B * Hh * Ww, C * P * P)

    E = weight.shape[0]
    w_mat = weight.reshape(E, C * P * P).T           # (C*P*P, E)

    out = patch_embed_matmul(patches, w_mat, bias, out_dtype=out_dtype)
    # conv out (B, E, Hh, Ww) -> flatten(2,3) -> (B, E, L) -> permute(0,2,1)
    # == our (B, L, E) with L row-major over (Hh, Ww).
    return out.reshape(B, Hh * Ww, E)


# --------------------------------- main -------------------------------------

if __name__ == "__main__":
    B, C, H, W = 2, 4, 16, 16       # small spectrogram-like input
    P = 4                           # size_of_patch (params.window_size)
    E = 32                          # embedding_size (params.trans_embedding_size)

    key = jax.random.PRNGKey(0)
    kx, kw, kb = jax.random.split(key, 3)

    x = jax.random.normal(kx, (B, C, H, W), dtype=jnp.float32)
    fan_in = C * P * P
    weight = jax.random.normal(kw, (E, C, P, P), dtype=jnp.float32) / math.sqrt(fan_in)
    bias = jax.random.normal(kb, (E,), dtype=jnp.float32) * 0.01

    out = embedding_patches_forward(x, weight, bias, P)
    out = jax.block_until_ready(out)

    # Pure-JAX f32 reference (same patch-extraction math, plain einsum).
    Hh, Ww = H // P, W // P
    xp = x.reshape(B, C, Hh, P, Ww, P).transpose(0, 2, 4, 1, 3, 5)
    patches = xp.reshape(B * Hh * Ww, C * P * P)
    ref = (patches @ weight.reshape(E, -1).T + bias).reshape(B, Hh * Ww, E)

    assert out.shape == (B, Hh * Ww, E), out.shape
    # Kernel contracts in bf16 (f32 accumulate) and stores bf16 -> looser
    # tolerance vs the f32 reference.
    assert jnp.allclose(out.astype(jnp.float32), ref, rtol=5e-2, atol=5e-2), \
        "mismatch vs reference"

    print("KERNEL_OK")
</pallas_src>

<mosaic_0001>
module attributes {stable_mosaic.version = 11 : i64} {
  func.func @_patch_embed_kernel(%arg0: i32, %arg1: memref<16x64xbf16, #tpu.memory_space<vmem>>, %arg2: memref<64x128xbf16, #tpu.memory_space<vmem>>, %arg3: memref<1x128xf32, #tpu.memory_space<vmem>>, %arg4: memref<16x128xbf16, #tpu.memory_space<vmem>>) attributes {dimension_semantics = [#tpu.dimension_semantics<parallel>], iteration_bounds = array<i64: 2>, scalar_prefetch = 0 : i64, scratch_operands = 0 : i64, tpu.core_type = #tpu.core_type<tc>, window_params = [{transform_indices = @transform_0, window_bounds = array<i64: 16, 64>}, {pipeline_mode = #tpu.pipeline_mode<synchronous>, transform_indices = @transform_1, window_bounds = array<i64: 64, 128>}, {pipeline_mode = #tpu.pipeline_mode<synchronous>, transform_indices = @transform_2, window_bounds = array<i64: 1, 128>}, {transform_indices = @transform_3, window_bounds = array<i64: 16, 128>}]} {
    %c0 = arith.constant 0 : index
    %c0_0 = arith.constant 0 : index
    %0 = vector.load %arg1[%c0, %c0_0] : memref<16x64xbf16, #tpu.memory_space<vmem>>, vector<16x64xbf16>
    %c0_1 = arith.constant 0 : index
    %c0_2 = arith.constant 0 : index
    %1 = vector.load %arg2[%c0_1, %c0_2] : memref<64x128xbf16, #tpu.memory_space<vmem>>, vector<64x128xbf16>
    %cst = arith.constant dense<0.000000e+00> : vector<16x128xf32>
    %2 = tpu.matmul %0, %1, %cst {dimension_numbers = #tpu.dot_dimension_numbers<[1], [0], [0], [1], [0, 0, 1, 1], [], []>} : vector<16x64xbf16>, vector<64x128xbf16>, vector<16x128xf32> -> vector<16x128xf32>
    %c0_3 = arith.constant 0 : index
    %c0_4 = arith.constant 0 : index
    %3 = vector.load %arg3[%c0_3, %c0_4] : memref<1x128xf32, #tpu.memory_space<vmem>>, vector<1x128xf32>
    %4 = vector.broadcast %3 : vector<1x128xf32> to vector<16x128xf32>
    %5 = arith.addf %2, %4 : vector<16x128xf32>
    %6 = arith.truncf %5 : vector<16x128xf32> to vector<16x128xbf16>
    %c0_5 = arith.constant 0 : index
    %c0_6 = arith.constant 0 : index
    %7 = vector.load %arg4[%c0_5, %c0_6] : memref<16x128xbf16, #tpu.memory_space<vmem>>, vector<16x128xbf16>
    tpu.vector_store %arg4[%c0_5, %c0_6], %6 {strides = array<i32>} : memref<16x128xbf16, #tpu.memory_space<vmem>>, vector<16x128xbf16>,
    return
  }
  func.func @transform_0(%arg0: i32) -> (i32, i32) {
    %c0_i32 = arith.constant 0 : i32
    %c0_i32_0 = arith.constant 0 : i32
    return %arg0, %c0_i32 : i32, i32
  }
  func.func @transform_1(%arg0: i32) -> (i32, i32) {
    %c0_i32 = arith.constant 0 : i32
    %c0_i32_0 = arith.constant 0 : i32
    %c0_i32_1 = arith.constant 0 : i32
    return %c0_i32, %c0_i32_0 : i32, i32
  }
  func.func @transform_2(%arg0: i32) -> (i32, i32) {
    %c0_i32 = arith.constant 0 : i32
    %c0_i32_0 = arith.constant 0 : i32
    %c0_i32_1 = arith.constant 0 : i32
    return %c0_i32, %c0_i32_0 : i32, i32
  }
  func.func @transform_3(%arg0: i32) -> (i32, i32) {
    %c0_i32 = arith.constant 0 : i32
    %c0_i32_0 = arith.constant 0 : i32
    return %arg0, %c0_i32 : i32, i32
  }
}

</mosaic_0001>

<llo_original>
// kernel: tpu_custom_call.1
$region0: #{tpu_custom_call.1}
  #allocation0 [shape = 'u32[]', space=smem, size = 0x4, offset = 0x4, fixed_abs, tag = 'smem constant byte address 0x4 - core index']
  #allocation1 [shape = 'u32[144,128]{1,0:T(1,128)}', space=vmem, size = 0x12000, scoped, tag = 'internal scratch']
  %s0 = inlined_call_operand.hbm [shape: bf16[32,64], index: 0, kind: input, shape index: {}]
  %s1 = inlined_call_operand.hbm [shape: bf16[64,128], index: 1, kind: input, shape index: {}]
  %s2 = inlined_call_operand.vmem [shape: f32[1,128], index: 2, kind: input, shape index: {}]
  %s3 = inlined_call_operand.hbm [shape: bf16[32,128], index: 3, kind: output, shape index: {}]
  %s4 = sld [smem:[#allocation0]]
  $region53: #{tpu_custom_call.1} parent=0
    _
  %s6 = ssub.s32 1, %s4
  %s7 = scalar_select 0, %s6, %s4
  $region1: #{tpu_custom_call.1} parent=0
    #allocation2 [shape = 'u8[8192]{0}', space=vmem, size = 0x2000, scoped, tag = 'input window, operand 0']
    #allocation3 [shape = 's32[2]{0}', space=sflag, size = 0x8, scoped, tag = 'scoped memory for tpu_custom_call.1']
    #allocation4 [shape = 's32[2]{0}', space=sflag, size = 0x8, scoped, tag = 'scoped memory for tpu_custom_call.1']
    #allocation5 [shape = 'u8[16384]{0}', space=vmem, size = 0x4000, scoped, tag = 'input window, operand 1, single buffered']
    #allocation6 [shape = 's32[1]{0}', space=sflag, size = 0x4, scoped, tag = 'scoped memory for tpu_custom_call.1']
    #allocation7 [shape = 'u8[8192]{0}', space=vmem, size = 0x2000, scoped, tag = 'output window, operand 0']
    %8 = vsyncpa [#allocation3], 0
    %s9 = scalar_lea.sflag [#allocation3], 1
    %10 = vsyncpa %s9, 0
    %11 = vsyncpa [#allocation6], 0
    %12 = vsyncpa [#allocation4], 0
    %s13 = scalar_lea.sflag [#allocation4], 1
    %14 = vsyncpa %s13, 0
    loop: start=0, step=1, limit=4
    $region2: #{tpu_custom_call.1} parent=1 // loop_pre_header
      _
    $region3: #{tpu_custom_call.1} parent=1 // loop_header
      %s16 = sphi 0, %s20
      %p17 = scmp.ge.s32.totalorder %s16, 4
      %s26 = sphi 0, %s28
      %s29 = sphi 0, %s26
      %s30 = sphi 0, %s29
      %s46 = sphi 0, %s30
      %s50 = sphi 0, %s50
      %s52 = sphi 0, %s50
      %s53 = sphi 0, %s52
      %s67 = sphi 0, %s53
      %s71 = sphi 0, %s71
      %s73 = sphi 0, %s71
      %s74 = sphi 0, %s73
      %s88 = sphi 0, %s74
      %s94 = sphi 0, %s96
      %s97 = sphi 0, %s94
      %s98 = sphi 0, %s97
      %s114 = sphi 0, %s98
    $region4: #{tpu_custom_call.1} parent=1 // loop_header_branch
      %19 = sbr.rel (%p17) target = $region8
    $region5: #{tpu_custom_call.1} parent=1 // loop_body
      %s21 = ssub.s32 %s16, 1
      %s22 = ssub.s32 %s16, 2
      %s23 = sadd.s32 %s16, 1
      %s24 = ssub.s32 %s16, %s23
      %p25 = scmp.eq.s32.totalorder %s24, 0
      %s27 = sadd.s32 %s26, 1
      %s28 = scalar_select %p25, %s26, %s27
      %p31 = pneg %p25
      %p32 = scmp.eq.s32.totalorder %s16, 1
      %p33 = por %p31, %p32
      %p34 = scmp.ne.s32.totalorder %s26, %s29
      %p35 = scmp.eq.s32.totalorder %s16, 0
      %p36 = por %p34, %p35
      %p37 = scmp.ne.s32.totalorder %s26, %s29
      %p38 = scmp.eq.s32.totalorder %s21, 1
      %p39 = por %p37, %p38
      %p40 = scmp.ne.s32.totalorder %s29, %s30
      %p41 = scmp.eq.s32.totalorder %s21, 0
      %p42 = por %p40, %p41
      %p43 = scmp.ne.s32.totalorder %s29, %s30
      %p44 = scmp.eq.s32.totalorder %s22, 1
      %p45 = por %p43, %p44
      %p47 = scmp.ne.s32.totalorder %s30, %s46
      %p48 = scmp.eq.s32.totalorder %s22, 0
      %p49 = por %p47, %p48
      %s51 = sadd.s32 %s50, 1
      %p54 = scmp.eq.s32.totalorder %s16, 1
      %p55 = scmp.ne.s32.totalorder %s50, %s52
      %p56 = scmp.eq.s32.totalorder %s16, 0
      %p57 = por %p55, %p56
      %p58 = scmp.ne.s32.totalorder %s50, %s52
      %p59 = scmp.eq.s32.totalorder %s21, 1
      %p60 = por %p58, %p59
      %p61 = scmp.ne.s32.totalorder %s52, %s53
      %p62 = scmp.eq.s32.totalorder %s21, 0
      %p63 = por %p61, %p62
      %p64 = scmp.ne.s32.totalorder %s52, %s53
      %p65 = scmp.eq.s32.totalorder %s22, 1
      %p66 = por %p64, %p65
      %p68 = scmp.ne.s32.totalorder %s53, %s67
      %p69 = scmp.eq.s32.totalorder %s22, 0
      %p70 = por %p68, %p69
      %s72 = sadd.s32 %s71, 1
      %p75 = scmp.eq.s32.totalorder %s16, 1
      %p76 = scmp.ne.s32.totalorder %s71, %s73
      %p77 = scmp.eq.s32.totalorder %s16, 0
      %p78 = por %p76, %p77
      %p79 = scmp.ne.s32.totalorder %s71, %s73
      %p80 = scmp.eq.s32.totalorder %s21, 1
      %p81 = por %p79, %p80
      %p82 = scmp.ne.s32.totalorder %s73, %s74
      %p83 = scmp.eq.s32.totalorder %s21, 0
      %p84 = por %p82, %p83
      %p85 = scmp.ne.s32.totalorder %s73, %s74
      %p86 = scmp.eq.s32.totalorder %s22, 1
      %p87 = por %p85, %p86
      %p89 = scmp.ne.s32.totalorder %s74, %s88
      %p90 = scmp.eq.s32.totalorder %s22, 0
      %p91 = por %p89, %p90
      %s92 = ssub.s32 %s16, %s23
      %p93 = scmp.eq.s32.totalorder %s92, 0
      %s95 = sadd.s32 %s94, 1
      %s96 = scalar_select %p93, %s94, %s95
      %p99 = pneg %p93
      %p100 = scmp.eq.s32.totalorder %s16, 1
      %p101 = por %p99, %p100
      %p102 = scmp.ne.s32.totalorder %s94, %s97
      %p103 = scmp.eq.s32.totalorder %s16, 0
      %p104 = por %p102, %p103
      %p105 = scmp.ne.s32.totalorder %s94, %s97
      %p106 = scmp.eq.s32.totalorder %s21, 1
      %p107 = por %p105, %p106
      %p108 = scmp.ne.s32.totalorder %s97, %s98
      %p109 = scmp.eq.s32.totalorder %s21, 0
      %p110 = por %p108, %p109
      %p111 = scmp.ne.s32.totalorder %s97, %s98
      %p112 = scmp.eq.s32.totalorder %s22, 1
      %p113 = por %p111, %p112
      %p115 = scmp.ne.s32.totalorder %s98, %s114
      %p116 = scmp.eq.s32.totalorder %s22, 0
      %p117 = por %p115, %p116
      %p118 = scmp.le.s32.totalorder 1, %s16
      %p119 = scmp.lt.s32.totalorder %s16, 3
      %p120 = pnand %p118, %p119
      %p121 = pneg %p120
      // Predicated region
      $region9: #{tpu_custom_call.1} parent=5 // pred_check
        _
      $region10: #{tpu_custom_call.1} parent=5 // pred_check_branch
        %123 = sbr.rel (%p120) target = $region12
      $region11: #{tpu_custom_call.1} parent=5 // pred_region
        %s124 = ssub.s32 %s16, 1
        // Predicated region
        $region13: #{tpu_custom_call.1} parent=11 // pred_check
          %p125 = pneg %p63
        $region14: #{tpu_custom_call.1} parent=11 // pred_check_branch
          %127 = sbr.rel (%p125) target = $region16
        $region15: #{tpu_custom_call.1} parent=11 // pred_region
          %s129 = ssub.s32 512, 512
          %130 = vsyncadd [#allocation6], %s129
          %s131 = sshll.u32 [#allocation5], 4
          %s132 = int_to_ptr.vmem [resolvable:$true] %s131
          %137 = dma.hbm_to_vmem [thread:$0]  %s1, 512, %s132, [#allocation6], 64, 64, 4
        $region16: #{tpu_custom_call.1} parent=11 // pred_fallthru
          _
        // Predicated region
        $region17: #{tpu_custom_call.1} parent=11 // pred_check
          %p138 = pneg %p84
        $region18: #{tpu_custom_call.1} parent=11 // pred_check_branch
          %140 = sbr.rel (%p138) target = $region20
        $region19: #{tpu_custom_call.1} parent=11 // pred_region
          _
        $region20: #{tpu_custom_call.1} parent=11 // pred_fallthru
          _
      $region12: #{tpu_custom_call.1} parent=5 // pred_fallthru
        _
      %p141 = scmp.lt.s32.totalorder %s16, 2
      // Predicated region
      $region21: #{tpu_custom_call.1} parent=5 // pred_check
        %p142 = pneg %p141
      $region22: #{tpu_custom_call.1} parent=5 // pred_check_branch
        %144 = sbr.rel (%p142) target = $region24
      $region23: #{tpu_custom_call.1} parent=5 // pred_region
        // Predicated region
        $region25: #{tpu_custom_call.1} parent=23 // pred_check
          %p145 = pneg %p36
        $region26: #{tpu_custom_call.1} parent=23 // pred_check_branch
          %147 = sbr.rel (%p145) target = $region28
        $region27: #{tpu_custom_call.1} parent=23 // pred_region
          %s148 = sand.u32 %s26, 1
          %s149 = scalar_lea.sflag [#allocation3], %s148
          %s150 = sand.u32 %s26, 1
          %s151 = smul.addr %s150, 8
          %s152 = scalar_lea.vmem [#allocation2], %s151
          %s153 = smul.u32 2, %s16
          %s155 = ssub.s32 128, 128
          %156 = vsyncadd %s149, %s155
          %s157 = smul.addr %s153, 64
          %s158 = scalar_lea.hbm %s0, %s157
          %s159 = sshll.u32 %s152, 4
          %s160 = int_to_ptr.vmem [resolvable:$true] %s159
          %165 = dma.hbm_to_vmem [thread:$0]  %s158, 128, %s160, %s149, 64, 64, 4
        $region28: #{tpu_custom_call.1} parent=23 // pred_fallthru
          _
      $region24: #{tpu_custom_call.1} parent=5 // pred_fallthru
        _
      %p166 = scmp.le.s32.totalorder 1, %s16
      %p167 = scmp.lt.s32.totalorder %s16, 3
      %p168 = pnand %p166, %p167
      %p169 = pneg %p168
      // Predicated region
      $region29: #{tpu_custom_call.1} parent=5 // pred_check
        _
      $region30: #{tpu_custom_call.1} parent=5 // pred_check_branch
        %171 = sbr.rel (%p168) target = $region32
      $region31: #{tpu_custom_call.1} parent=5 // pred_region
        %s172 = ssub.s32 %s16, 1
        %s173 = sand.u32 %s29, 1
        %s174 = scalar_lea.sflag [#allocation3], %s173
        %s175 = sand.u32 %s29, 1
        %s176 = smul.addr %s175, 8
        %s177 = scalar_lea.vmem [#allocation2], %s176
        // Predicated region
        $region33: #{tpu_custom_call.1} parent=31 // pred_check
          %p178 = pneg %p42
        $region34: #{tpu_custom_call.1} parent=31 // pred_check_branch
          %180 = sbr.rel (%p178) target = $region36
        $region35: #{tpu_custom_call.1} parent=31 // pred_region
          %181 = dma.done %s174, 128
        $region36: #{tpu_custom_call.1} parent=31 // pred_fallthru
          _
        // Predicated region
        $region37: #{tpu_custom_call.1} parent=31 // pred_check
          %p182 = pneg %p63
        $region38: #{tpu_custom_call.1} parent=31 // pred_check_branch
          %184 = sbr.rel (%p182) target = $region40
        $region39: #{tpu_custom_call.1} parent=31 // pred_region
          %185 = dma.done [#allocation6], 512
        $region40: #{tpu_custom_call.1} parent=31 // pred_fallthru
          _
        %s186 = sand.u32 %s29, 1
        %s187 = scalar_lea.sflag [#allocation3], %s186
        %s188 = sand.u32 %s29, 1
        %s189 = smul.addr %s188, 8
        %s190 = scalar_lea.vmem [#allocation2], %s189
        %p191 = pneg %p42
        %p192 = pneg %p39
        %p193 = pneg %p63
        %p194 = pneg %p60
        %p195 = pneg %p84
        %p196 = pneg %p81
        %p197 = pneg %p110
        %p198 = pneg %p107
        %s199 = sand.u32 %s97, 1
        %s200 = scalar_lea.sflag [#allocation4], %s199
        %s201 = sand.u32 %s97, 1
        %s202 = smul.addr %s201, 8
        %s203 = scalar_lea.vmem [#allocation7], %s202
        %s204 = smul.u32 2, %s21
        %s205 = smul.u32 2, %s21
        %v207 = vld [vmem:[%s177] sm:$0xf]
        %v208 = vld [vmem:[%s177 + $0x4] sm:$0xf]
        %v209 = vld [vmem:[#allocation5] sm:$0xf]
        %v210 = vld [vmem:[#allocation5 + $0x4] sm:$0xf]
        %v211 = vld [vmem:[#allocation5 + $0x8] sm:$0xf]
        %v212 = vld [vmem:[#allocation5 + $0xc] sm:$0xf]
        %v213 = vld [vmem:[#allocation5 + $0x10] sm:$0xf]
        %v214 = vld [vmem:[#allocation5 + $0x14] sm:$0xf]
        %v215 = vld [vmem:[#allocation5 + $0x18] sm:$0xf]
        %v216 = vld [vmem:[#allocation5 + $0x1c] sm:$0xf]
        %v217 = vld [vmem:[%s2] sm:$0x1]
        %v219 = vlaneseq
        %v220 = vshrl.u32 %v219, 7
        %v221 = vsub.s32 0, %v220
        %v222 = vrot.slane %v217, %v221
        %v226 = vunpack.c.l.b16 %v207
        %v227 = vunpack.c.l.b16 %v208
        %v228 = vpack.c.b16 %v227, %v226
        %v237 = vunpack.c.l.b16 %v209
        %v238 = vunpack.c.l.b16 %v210
        %v239 = vunpack.c.l.b16 %v211
        %v240 = vunpack.c.l.b16 %v212
        %v241 = vunpack.c.l.b16 %v213
        %v242 = vunpack.c.l.b16 %v214
        %v243 = vunpack.c.l.b16 %v215
        %v244 = vunpack.c.l.b16 %v216
        %v245 = vpack.c.b16 %v238, %v237
        %v246 = vpack.c.b16 %v240, %v239
        %v247 = vpack.c.b16 %v242, %v241
        %v248 = vpack.c.b16 %v244, %v243
        %vm253 = vcmask 523264
        %v255 = vsel %vm253, %v228, 0
        %257 = vmatprep.subr.bf16.mxu0 0
        %258 = vmatpush1.bf16.msra.mxu0 %v245
        %259 = vmatprep.subr.bf16.mxu0 0
        %260 = vmatpush1.bf16.msra.mxu0 %v246
        %261 = vmatprep.subr.bf16.mxu0 0
        %262 = vmatpush1.bf16.msra.mxu0 %v247
        %263 = vmatprep.subr.bf16.mxu0 0
        %264 = vmatpush1.bf16.msra.mxu0 %v248
        %265 = vmatprep.subr.bf16.mxu0 0
        %266 = vmatpush1.bf16.msra.mxu0 0
        %267 = vmatprep.subr.bf16.mxu0 0
        %268 = vmatpush1.bf16.msra.mxu0 0
        %269 = vmatprep.subr.bf16.mxu0 0
        %270 = vmatpush1.bf16.msra.mxu0 0
        %271 = vmatprep.subr.bf16.mxu0 0
        %272 = vmatpush1.bf16.msra.mxu0 0
        %273 = vmatprep.subr.bf16.mxu0 0
        %274 = vmatpush1.bf16.msra.mxu0 0
        %275 = vmatprep.subr.bf16.mxu0 0
        %276 = vmatpush1.bf16.msra.mxu0 0
        %277 = vmatprep.subr.bf16.mxu0 0
        %278 = vmatpush1.bf16.msra.mxu0 0
        %279 = vmatprep.subr.bf16.mxu0 0
        %280 = vmatpush1.bf16.msra.mxu0 0
        %281 = vmatprep.subr.bf16.mxu0 0
        %282 = vmatpush1.bf16.msra.mxu0 0
        %283 = vmatprep.subr.bf16.mxu0 0
        %284 = vmatpush1.bf16.msra.mxu0 0
        %285 = vmatprep.subr.bf16.mxu0 0
        %286 = vmatpush1.bf16.msra.mxu0 0
        %287 = vmatprep.subr.bf16.mxu0 0
        %288 = vmatpush1.bf16.msra.mxu0 0
        %289 = vmatprep.mubr.bf16.mxu0 0
        %290 = vmatmul.mubr.bf16.gmra.mrb[0].mxu0 %v255
        %v291 = vpop.f32.mrb[0].mxu0
        %v292 = vadd.f32 %v222, %v291
        %v293 = vpop.f32.mrb[0].mxu0
        %v294 = vpop.f32.mrb[0].mxu0
        %v295 = vadd.f32 %v222, %v294
        %v296 = vpop.f32.mrb[0].mxu0
        %297 = vdwg.mxu0
        %v298 = vpack.c.bf16 %v295, %v292
        %v300 = vunpack.c.l.b16 %v298
        %v301 = vunpack.c.h.b16 %v298
        %v302 = vpack.c.b16 %v300, %v300
        %v303 = vpack.c.b16 %v301, %v301
        %306 = vst [vmem:[%s203] sm:$0xf] %v302
        %307 = vst [vmem:[%s203 + $0x4] sm:$0xf] %v303
        %s308 = sand.u32 %s97, 1
        %s309 = scalar_lea.sflag [#allocation4], %s308
        %s310 = sand.u32 %s97, 1
        %s311 = smul.addr %s310, 8
        %s312 = scalar_lea.vmem [#allocation7], %s311
        // Predicated region
        $region41: #{tpu_custom_call.1} parent=31 // pred_check
          %p313 = pneg %p107
        $region42: #{tpu_custom_call.1} parent=31 // pred_check_branch
          %315 = sbr.rel (%p313) target = $region44
        $region43: #{tpu_custom_call.1} parent=31 // pred_region
          %s316 = smul.u32 2, %s21
          %s318 = ssub.s32 128, 128
          %319 = vsyncadd %s309, %s318
          %s320 = smul.addr %s316, 64
          %s321 = scalar_lea.hbm %s3, %s320
          %s322 = sshll.u32 %s312, 4
          %s323 = int_to_ptr.vmem [resolvable:$true] %s322
          %328 = dma.vmem_to_hbm [thread:$0]  %s323, 128, %s321, %s309, 64, 64, 4
        $region44: #{tpu_custom_call.1} parent=31 // pred_fallthru
          _
      $region32: #{tpu_custom_call.1} parent=5 // pred_fallthru
        _
      %p329 = scmp.le.s32.totalorder 2, %s16
      // Predicated region
      $region45: #{tpu_custom_call.1} parent=5 // pred_check
        %p330 = pneg %p329
      $region46: #{tpu_custom_call.1} parent=5 // pred_check_branch
        %332 = sbr.rel (%p330) target = $region48
      $region47: #{tpu_custom_call.1} parent=5 // pred_region
        %s333 = ssub.s32 %s16, 2
        // Predicated region
        $region49: #{tpu_custom_call.1} parent=47 // pred_check
          %p334 = pneg %p113
        $region50: #{tpu_custom_call.1} parent=47 // pred_check_branch
          %336 = sbr.rel (%p334) target = $region52
        $region51: #{tpu_custom_call.1} parent=47 // pred_region
          %s337 = sand.u32 %s98, 1
          %s338 = scalar_lea.sflag [#allocation4], %s337
          %s339 = sand.u32 %s98, 1
          %s340 = smul.addr %s339, 8
          %s341 = scalar_lea.vmem [#allocation7], %s340
          %342 = dma.done %s338, 128
        $region52: #{tpu_custom_call.1} parent=47 // pred_fallthru
          _
      $region48: #{tpu_custom_call.1} parent=5 // pred_fallthru
        _
    $region6: #{tpu_custom_call.1} parent=1 // loop_footer
      %s20 = sadd.s32 1, %s16
    $region7: #{tpu_custom_call.1} parent=1 // loop_footer_branch
      %15 = sbr.rel target = $region3
    $region8: #{tpu_custom_call.1} parent=1 // loop_exit
      _
    %343 = vsyncpa [#allocation3], 1
    %s344 = scalar_lea.sflag [#allocation3], 1
    %345 = vsyncpa %s344, 1
    %346 = vsyncpa [#allocation6], 1
    %347 = vsyncpa [#allocation4], 1
    %s348 = scalar_lea.sflag [#allocation4], 1
    %349 = vsyncpa %s348, 1

</llo_original>
